<compile_context>
chip_gen: v5e
topology: v5e:2x2
jax: 0.10.0
libtpu: 0.0.40
codegen_flags: <defaults>
</compile_context>

<pallas_src>
import functools

import jax
import jax.numpy as jnp
from jax.experimental import pallas as pl
from jax.experimental.pallas import tpu as pltpu


def _value_net_kernel(s_ref, w1_ref, b1_ref, w2_ref, b2_ref, w3_ref, b3_ref, o_ref):
    """Transposed MLP tile: batch on the 128-lane axis.

    s_ref : [state_dim, TILE_B]   (compute dtype)
    w1_ref: [H1, state_dim]       b1_ref: [H1, 1] (f32)
    w2_ref: [H2, H1]              b2_ref: [H2, 1] (f32)
    w3_ref: [1, H2]               b3_ref: [1, 1]  (f32)
    o_ref : [1, TILE_B]           (f32, lane-dense)
    """
    # fc_in + ReLU  (MXU, f32 accumulate)
    h1 = jnp.dot(w1_ref[...], s_ref[...], preferred_element_type=jnp.float32)
    h1 = jnp.maximum(h1 + b1_ref[...], 0.0)

    # hidden 64 -> 64 + ReLU
    h2 = jnp.dot(w2_ref[...], h1.astype(w2_ref.dtype),
                 preferred_element_type=jnp.float32)
    h2 = jnp.maximum(h2 + b2_ref[...], 0.0)

    # fc_out 64 -> 1 as an MXU dot: result [1, TILE_B] -> unmasked lane-dense store.
    v = jnp.dot(w3_ref[...], h2.astype(w3_ref.dtype),
                preferred_element_type=jnp.float32)
    o_ref[...] = (v + b3_ref[...]).astype(o_ref.dtype)


@functools.partial(jax.jit, static_argnames=("tile_b", "compute_dtype"))
def ppo_value_net_forward(s, params, *, tile_b=512, compute_dtype=jnp.float32):
    """s: [B, state_dim] f32 -> [B, 1] f32.  params in PyTorch layout (W=[out,in])."""
    w1, b1, w2, b2, w3, b3 = params
    B, state_dim = s.shape
    H1 = w1.shape[0]
    H2 = w2.shape[0]

    # Batch tile: multiple of 128 (lane width), no bigger than the (padded) batch.
    tile_b = pl.cdiv(int(tile_b), 128) * 128
    tile_b = max(128, min(tile_b, pl.cdiv(B, 128) * 128))
    b_pad = pl.cdiv(B, tile_b) * tile_b
    num_tiles = b_pad // tile_b

    itemsize = jnp.dtype(compute_dtype).itemsize

    # --- plain-JAX glue: transpose to lane-dense layout and pad the batch tail ---
    s_t = jnp.pad(s.astype(compute_dtype).T, ((0, 0), (0, b_pad - B)))
    w1c = w1.astype(compute_dtype)
    w2c = w2.astype(compute_dtype)
    w3c = w3.reshape(1, H2).astype(compute_dtype)
    b1c = b1.reshape(H1, 1).astype(jnp.float32)
    b2c = b2.reshape(H2, 1).astype(jnp.float32)
    b3c = b3.reshape(1, 1).astype(jnp.float32)

    def resident(shape):
        # Weight / bias blocks: full array, constant block index -> stays in VMEM.
        return pl.BlockSpec(shape, lambda i: (0, 0))

    grid_spec = pltpu.PrefetchScalarGridSpec(
        num_scalar_prefetch=0,
        grid=(num_tiles,),
        in_specs=[
            pl.BlockSpec((state_dim, tile_b), lambda i: (0, i)),  # s tile (pipelined)
            resident((H1, state_dim)),
            resident((H1, 1)),
            resident((H2, H1)),
            resident((H2, 1)),
            resident((1, H2)),
            resident((1, 1)),
        ],
        out_specs=pl.BlockSpec((1, tile_b), lambda i: (0, i)),
    )

    # VMEM footprint: double-buffered s/out tiles + resident params + h1/h2 temps.
    tile_vmem = (
        2 * tile_b * state_dim * itemsize          # s tile, double-buffered
        + 2 * tile_b * 4                           # out tile, double-buffered
        + 2 * (H1 * state_dim + H2 * H1 + H2) * itemsize
        + 2 * (H1 + H2 + 1) * 4                    # params (conservatively x2 buffers)
        + 2 * tile_b * (H1 + H2) * 4               # h1 / h2 intermediates
    )
    vmem_limit = int(min(max(tile_vmem * 2, 4 << 20) + (2 << 20), 32 << 20))

    cost = pl.CostEstimate(
        flops=2 * B * (state_dim * H1 + H1 * H2 + H2),
        transcendentals=0,
        bytes_accessed=B * state_dim * itemsize
        + (H1 * state_dim + H2 * H1 + H2) * itemsize
        + (H1 + H2 + 1) * 4
        + B * 4,
    )

    out = pl.pallas_call(
        _value_net_kernel,
        out_shape=jax.ShapeDtypeStruct((1, b_pad), jnp.float32),
        grid_spec=grid_spec,
        compiler_params=pltpu.CompilerParams(
            dimension_semantics=("parallel",),   # shard batch tiles across TCs (v7x)
            vmem_limit_bytes=vmem_limit,
        ),
        cost_estimate=cost,
    )(s_t, w1c, b1c, w2c, b2c, w3c, b3c)

    return out[0, :B].reshape(B, 1)


def init_params(state_dim, key, hidden=64):
    """Deterministic synthetic init, PyTorch nn.Linear layout (W=[out,in]) & scaling."""
    k1, k2, k3, k4, k5, k6 = jax.random.split(key, 6)
    lim1 = 1.0 / jnp.sqrt(float(state_dim))
    lim2 = 1.0 / jnp.sqrt(float(hidden))
    w1 = jax.random.uniform(k1, (hidden, state_dim), jnp.float32, -lim1, lim1)
    b1 = jax.random.uniform(k2, (hidden,), jnp.float32, -lim1, lim1)
    w2 = jax.random.uniform(k3, (hidden, hidden), jnp.float32, -lim2, lim2)
    b2 = jax.random.uniform(k4, (hidden,), jnp.float32, -lim2, lim2)
    w3 = jax.random.uniform(k5, (1, hidden), jnp.float32, -lim2, lim2)
    b3 = jax.random.uniform(k6, (1,), jnp.float32, -lim2, lim2)
    return (w1, b1, w2, b2, w3, b3)


def reference_forward(s, params):
    """Pure-JAX mirror of the PyTorch forward pass."""
    w1, b1, w2, b2, w3, b3 = params
    h1 = jnp.maximum(s @ w1.T + b1, 0.0)
    h2 = jnp.maximum(h1 @ w2.T + b2, 0.0)
    return h2 @ w3.T + b3


if __name__ == "__main__":
    key = jax.random.PRNGKey(0)
    kx, kp = jax.random.split(key)

    batch, state_dim = 4, 16
    s = jax.random.normal(kx, (batch, state_dim), jnp.float32)
    params = init_params(state_dim, kp)
    ref = reference_forward(s, params)

    # f32 path (default).
    out = jax.block_until_ready(ppo_value_net_forward(s, params))
    assert out.shape == (batch, 1)
    assert jnp.allclose(out, ref, atol=1e-5, rtol=1e-5)

    # bf16-input path (v6e/v7x HBM-bandwidth optimization), f32 accumulation.
    out_bf16 = jax.block_until_ready(
        ppo_value_net_forward(s, params, compute_dtype=jnp.bfloat16))
    assert jnp.allclose(out_bf16, ref, atol=1e-1, rtol=1e-1)

    print("KERNEL_OK")
</pallas_src>

<mosaic_0001>
module attributes {stable_mosaic.version = 11 : i64} {
  func.func @_value_net_kernel(%arg0: i32, %arg1: memref<16x128xf32, #tpu.memory_space<vmem>>, %arg2: memref<64x16xf32, #tpu.memory_space<vmem>>, %arg3: memref<64x1xf32, #tpu.memory_space<vmem>>, %arg4: memref<64x64xf32, #tpu.memory_space<vmem>>, %arg5: memref<64x1xf32, #tpu.memory_space<vmem>>, %arg6: memref<1x64xf32, #tpu.memory_space<vmem>>, %arg7: memref<1x1xf32, #tpu.memory_space<vmem>>, %arg8: memref<1x128xf32, #tpu.memory_space<vmem>>) attributes {dimension_semantics = [#tpu.dimension_semantics<parallel>], iteration_bounds = array<i64: 1>, scalar_prefetch = 0 : i64, scratch_operands = 0 : i64, tpu.core_type = #tpu.core_type<tc>, window_params = [{transform_indices = @transform_0, window_bounds = array<i64: 16, 128>}, {pipeline_mode = #tpu.pipeline_mode<synchronous>, transform_indices = @transform_1, window_bounds = array<i64: 64, 16>}, {pipeline_mode = #tpu.pipeline_mode<synchronous>, transform_indices = @transform_2, window_bounds = array<i64: 64, 1>}, {pipeline_mode = #tpu.pipeline_mode<synchronous>, transform_indices = @transform_3, window_bounds = array<i64: 64, 64>}, {pipeline_mode = #tpu.pipeline_mode<synchronous>, transform_indices = @transform_4, window_bounds = array<i64: 64, 1>}, {pipeline_mode = #tpu.pipeline_mode<synchronous>, transform_indices = @transform_5, window_bounds = array<i64: 1, 64>}, {pipeline_mode = #tpu.pipeline_mode<synchronous>, transform_indices = @transform_6, window_bounds = array<i64: 1, 1>}, {transform_indices = @transform_7, window_bounds = array<i64: 1, 128>}]} {
    %c0 = arith.constant 0 : index
    %c0_0 = arith.constant 0 : index
    %0 = vector.load %arg2[%c0, %c0_0] : memref<64x16xf32, #tpu.memory_space<vmem>>, vector<64x16xf32>
    %c0_1 = arith.constant 0 : index
    %c0_2 = arith.constant 0 : index
    %1 = vector.load %arg1[%c0_1, %c0_2] : memref<16x128xf32, #tpu.memory_space<vmem>>, vector<16x128xf32>
    %cst = arith.constant dense<0.000000e+00> : vector<64x128xf32>
    %2 = tpu.matmul %0, %1, %cst {dimension_numbers = #tpu.dot_dimension_numbers<[1], [0], [0], [1], [0, 0, 1, 1], [], []>} : vector<64x16xf32>, vector<16x128xf32>, vector<64x128xf32> -> vector<64x128xf32>
    %c0_3 = arith.constant 0 : index
    %c0_4 = arith.constant 0 : index
    %3 = vector.load %arg3[%c0_3, %c0_4] : memref<64x1xf32, #tpu.memory_space<vmem>>, vector<64x1xf32>
    %4 = vector.broadcast %3 : vector<64x1xf32> to vector<64x128xf32>
    %5 = arith.addf %2, %4 : vector<64x128xf32>
    %cst_5 = arith.constant 0.000000e+00 : f32
    %6 = vector.broadcast %cst_5 : f32 to vector<64x128xf32>
    %7 = arith.maximumf %5, %6 : vector<64x128xf32>
    %c0_6 = arith.constant 0 : index
    %c0_7 = arith.constant 0 : index
    %8 = vector.load %arg4[%c0_6, %c0_7] : memref<64x64xf32, #tpu.memory_space<vmem>>, vector<64x64xf32>
    %cst_8 = arith.constant dense<0.000000e+00> : vector<64x128xf32>
    %9 = tpu.matmul %8, %7, %cst_8 {dimension_numbers = #tpu.dot_dimension_numbers<[1], [0], [0], [1], [0, 0, 1, 1], [], []>} : vector<64x64xf32>, vector<64x128xf32>, vector<64x128xf32> -> vector<64x128xf32>
    %c0_9 = arith.constant 0 : index
    %c0_10 = arith.constant 0 : index
    %10 = vector.load %arg5[%c0_9, %c0_10] : memref<64x1xf32, #tpu.memory_space<vmem>>, vector<64x1xf32>
    %11 = vector.broadcast %10 : vector<64x1xf32> to vector<64x128xf32>
    %12 = arith.addf %9, %11 : vector<64x128xf32>
    %cst_11 = arith.constant 0.000000e+00 : f32
    %13 = vector.broadcast %cst_11 : f32 to vector<64x128xf32>
    %14 = arith.maximumf %12, %13 : vector<64x128xf32>
    %c0_12 = arith.constant 0 : index
    %c0_13 = arith.constant 0 : index
    %15 = vector.load %arg6[%c0_12, %c0_13] : memref<1x64xf32, #tpu.memory_space<vmem>>, vector<1x64xf32>
    %cst_14 = arith.constant dense<0.000000e+00> : vector<1x128xf32>
    %16 = tpu.matmul %15, %14, %cst_14 {dimension_numbers = #tpu.dot_dimension_numbers<[1], [0], [0], [1], [0, 0, 1, 1], [], []>} : vector<1x64xf32>, vector<64x128xf32>, vector<1x128xf32> -> vector<1x128xf32>
    %c0_15 = arith.constant 0 : index
    %c0_16 = arith.constant 0 : index
    %17 = vector.load %arg7[%c0_15, %c0_16] : memref<1x1xf32, #tpu.memory_space<vmem>>, vector<1x1xf32>
    %18 = vector.broadcast %17 : vector<1x1xf32> to vector<1x128xf32>
    %19 = arith.addf %16, %18 : vector<1x128xf32>
    %c0_17 = arith.constant 0 : index
    %c0_18 = arith.constant 0 : index
    %20 = vector.load %arg8[%c0_17, %c0_18] : memref<1x128xf32, #tpu.memory_space<vmem>>, vector<1x128xf32>
    tpu.vector_store %arg8[%c0_17, %c0_18], %19 {strides = array<i32>} : memref<1x128xf32, #tpu.memory_space<vmem>>, vector<1x128xf32>,
    return
  }
  func.func @transform_0(%arg0: i32) -> (i32, i32) {
    %c0_i32 = arith.constant 0 : i32
    %c0_i32_0 = arith.constant 0 : i32
    return %c0_i32, %arg0 : i32, i32
  }
  func.func @transform_1(%arg0: i32) -> (i32, i32) {
    %c0_i32 = arith.constant 0 : i32
    %c0_i32_0 = arith.constant 0 : i32
    %c0_i32_1 = arith.constant 0 : i32
    return %c0_i32, %c0_i32_0 : i32, i32
  }
  func.func @transform_2(%arg0: i32) -> (i32, i32) {
    %c0_i32 = arith.constant 0 : i32
    %c0_i32_0 = arith.constant 0 : i32
    %c0_i32_1 = arith.constant 0 : i32
    return %c0_i32, %c0_i32_0 : i32, i32
  }
  func.func @transform_3(%arg0: i32) -> (i32, i32) {
    %c0_i32 = arith.constant 0 : i32
    %c0_i32_0 = arith.constant 0 : i32
    %c0_i32_1 = arith.constant 0 : i32
    return %c0_i32, %c0_i32_0 : i32, i32
  }
  func.func @transform_4(%arg0: i32) -> (i32, i32) {
    %c0_i32 = arith.constant 0 : i32
    %c0_i32_0 = arith.constant 0 : i32
    %c0_i32_1 = arith.constant 0 : i32
    return %c0_i32, %c0_i32_0 : i32, i32
  }
  func.func @transform_5(%arg0: i32) -> (i32, i32) {
    %c0_i32 = arith.constant 0 : i32
    %c0_i32_0 = arith.constant 0 : i32
    %c0_i32_1 = arith.constant 0 : i32
    return %c0_i32, %c0_i32_0 : i32, i32
  }
  func.func @transform_6(%arg0: i32) -> (i32, i32) {
    %c0_i32 = arith.constant 0 : i32
    %c0_i32_0 = arith.constant 0 : i32
    %c0_i32_1 = arith.constant 0 : i32
    return %c0_i32, %c0_i32_0 : i32, i32
  }
  func.func @transform_7(%arg0: i32) -> (i32, i32) {
    %c0_i32 = arith.constant 0 : i32
    %c0_i32_0 = arith.constant 0 : i32
    return %c0_i32, %arg0 : i32, i32
  }
}

</mosaic_0001>

<llo_original>
// kernel: ppo_value_net_forward.1
$region0: #{ppo_value_net_forward.1}
  #allocation0 [shape = 'u32[]', space=smem, size = 0x4, offset = 0x4, fixed_abs, tag = 'smem constant byte address 0x4 - core index']
  #allocation1 [shape = 'u32[72,128]{1,0:T(1,128)}', space=vmem, size = 0x9000, scoped, tag = 'internal scratch']
  #allocation2 [shape = 'f32[1,1]{1,0:T(1,128)S(1)}', space=vmem, size = 0x200, scoped, tag = 'scoped memory for ppo_value_net_forward.1']
  %s0 = inlined_call_operand.vmem [shape: f32[16,128], index: 0, kind: input, shape index: {}]
  %s1 = inlined_call_operand.vmem [shape: f32[64,16], index: 1, kind: input, shape index: {}]
  %s2 = inlined_call_operand.vmem [shape: f32[64,1], index: 2, kind: input, shape index: {}]
  %s3 = inlined_call_operand.vmem [shape: f32[64,64], index: 3, kind: input, shape index: {}]
  %s4 = inlined_call_operand.vmem [shape: f32[64,1], index: 4, kind: input, shape index: {}]
  %s5 = inlined_call_operand.vmem [shape: f32[1,64], index: 5, kind: input, shape index: {}]
  %s6 = inlined_call_operand.<no memory space> [shape: f32[1,1], index: 6, kind: input, shape index: {}]
  %s7 = inlined_call_operand.vmem [shape: f32[1,128], index: 7, kind: output, shape index: {}]
  %s8 = sld [smem:[#allocation0]]
  $region38: #{ppo_value_net_forward.1} parent=0
    _
  %s10 = ssub.s32 1, %s8
  %s11 = scalar_select 0, %s10, %s8
  %v12 = vstv %s6
  %13 = vst [vmem:[#allocation2] sm:$0x1] %v12
  // Predicated region
  $region2: #{ppo_value_net_forward.1} parent=0 // pred_check
    _
  $region3: #{ppo_value_net_forward.1} parent=0 // pred_check_branch
    %15 = sbr.rel (0) target = $region5
  $region4: #{ppo_value_net_forward.1} parent=0 // pred_region
    _
  $region5: #{ppo_value_net_forward.1} parent=0 // pred_fallthru
    _
  // Predicated region
  $region6: #{ppo_value_net_forward.1} parent=0 // pred_check
    _
  $region7: #{ppo_value_net_forward.1} parent=0 // pred_check_branch
    %17 = sbr.rel (0) target = $region9
  $region8: #{ppo_value_net_forward.1} parent=0 // pred_region
    _
  $region9: #{ppo_value_net_forward.1} parent=0 // pred_fallthru
    _
  // Predicated region
  $region10: #{ppo_value_net_forward.1} parent=0 // pred_check
    _
  $region11: #{ppo_value_net_forward.1} parent=0 // pred_check_branch
    %19 = sbr.rel (0) target = $region13
  $region12: #{ppo_value_net_forward.1} parent=0 // pred_region
    _
  $region13: #{ppo_value_net_forward.1} parent=0 // pred_fallthru
    _
  // Predicated region
  $region14: #{ppo_value_net_forward.1} parent=0 // pred_check
    _
  $region15: #{ppo_value_net_forward.1} parent=0 // pred_check_branch
    %21 = sbr.rel (0) target = $region17
  $region16: #{ppo_value_net_forward.1} parent=0 // pred_region
    _
  $region17: #{ppo_value_net_forward.1} parent=0 // pred_fallthru
    _
  // Predicated region
  $region18: #{ppo_value_net_forward.1} parent=0 // pred_check
    _
  $region19: #{ppo_value_net_forward.1} parent=0 // pred_check_branch
    %23 = sbr.rel (0) target = $region21
  $region20: #{ppo_value_net_forward.1} parent=0 // pred_region
    _
  $region21: #{ppo_value_net_forward.1} parent=0 // pred_fallthru
    _
  // Predicated region
  $region22: #{ppo_value_net_forward.1} parent=0 // pred_check
    _
  $region23: #{ppo_value_net_forward.1} parent=0 // pred_check_branch
    %25 = sbr.rel (0) target = $region25
  $region24: #{ppo_value_net_forward.1} parent=0 // pred_region
    _
  $region25: #{ppo_value_net_forward.1} parent=0 // pred_fallthru
    _
  // Predicated region
  $region26: #{ppo_value_net_forward.1} parent=0 // pred_check
    _
  $region27: #{ppo_value_net_forward.1} parent=0 // pred_check_branch
    %27 = sbr.rel (0) target = $region29
  $region28: #{ppo_value_net_forward.1} parent=0 // pred_region
    _
  $region29: #{ppo_value_net_forward.1} parent=0 // pred_fallthru
    _
  %v28 = vld [vmem:[%s1] sm:$0xff]
  %v29 = vld [vmem:[%s1 + $0x8] sm:$0xff]
  %v30 = vld [vmem:[%s1 + $0x10] sm:$0xff]
  %v31 = vld [vmem:[%s1 + $0x18] sm:$0xff]
  %v32 = vld [vmem:[%s1 + $0x20] sm:$0xff]
  %v33 = vld [vmem:[%s1 + $0x28] sm:$0xff]
  %v34 = vld [vmem:[%s1 + $0x30] sm:$0xff]
  %v35 = vld [vmem:[%s1 + $0x38] sm:$0xff]
  %v36 = vld [vmem:[%s0] sm:$0xff]
  %v37 = vld [vmem:[%s0 + $0x8] sm:$0xff]
  %v38 = vld [vmem:[%s2] sm:$0xff]
  %v39 = vld [vmem:[%s2 + $0x8] sm:$0xff]
  %v40 = vld [vmem:[%s2 + $0x10] sm:$0xff]
  %v41 = vld [vmem:[%s2 + $0x18] sm:$0xff]
  %v42 = vld [vmem:[%s2 + $0x20] sm:$0xff]
  %v43 = vld [vmem:[%s2 + $0x28] sm:$0xff]
  %v44 = vld [vmem:[%s2 + $0x30] sm:$0xff]
  %v45 = vld [vmem:[%s2 + $0x38] sm:$0xff]
  %47 = vset.pattern.permute.xlu0 0
  %48 = vperm.xlu0 %47, %v38
  %v49 = vpop.permute.xlu0 %48
  %52 = vset.pattern.permute.xlu0 0
  %53 = vperm.xlu0 %52, %v39
  %v54 = vpop.permute.xlu0 %53
  %57 = vset.pattern.permute.xlu0 0
  %58 = vperm.xlu0 %57, %v40
  %v59 = vpop.permute.xlu0 %58
  %62 = vset.pattern.permute.xlu0 0
  %63 = vperm.xlu0 %62, %v41
  %v64 = vpop.permute.xlu0 %63
  %67 = vset.pattern.permute.xlu0 0
  %68 = vperm.xlu0 %67, %v42
  %v69 = vpop.permute.xlu0 %68
  %72 = vset.pattern.permute.xlu0 0
  %73 = vperm.xlu0 %72, %v43
  %v74 = vpop.permute.xlu0 %73
  %77 = vset.pattern.permute.xlu0 0
  %78 = vperm.xlu0 %77, %v44
  %v79 = vpop.permute.xlu0 %78
  %82 = vset.pattern.permute.xlu0 0
  %83 = vperm.xlu0 %82, %v45
  %v84 = vpop.permute.xlu0 %83
  %vm86 = vcmask 130048
  %v88 = vsel %vm86, %v28, 0
  %v91 = vsel %vm86, %v29, 0
  %v94 = vsel %vm86, %v30, 0
  %v97 = vsel %vm86, %v31, 0
  %v100 = vsel %vm86, %v32, 0
  %v103 = vsel %vm86, %v33, 0
  %v106 = vsel %vm86, %v34, 0
  %v109 = vsel %vm86, %v35, 0
  %111 = vmatpush.msra.mxu0 0.0
  %112 = vmatpush.msra.mxu0 0.0
  %113 = vmatpush.msra.mxu0 0.0
  %114 = vmatpush.msra.mxu0 0.0
  %115 = vmatpush.msra.mxu0 0.0
  %116 = vmatpush.msra.mxu0 0.0
  %117 = vmatpush.msra.mxu0 0.0
  %118 = vmatpush.msra.mxu0 0.0
  %119 = vmatpush.msra.mxu0 0.0
  %120 = vmatpush.msra.mxu0 0.0
  %121 = vmatpush.msra.mxu0 0.0
  %122 = vmatpush.msra.mxu0 0.0
  %123 = vmatpush.msra.mxu0 0.0
  %124 = vmatpush.msra.mxu0 0.0
  %125 = vmatpush.msra.mxu0 %v37
  %126 = vmatpush.msra.mxu0 %v36
  %127 = vmatmul.f32.gmra.mxu0 %v88
  %v128 = vpop.f32.mrf.mxu0
  %v129 = vadd.f32 %v49, %v128
  %130 = vmatmul.f32.gmra.mxu0 %v91
  %v131 = vpop.f32.mrf.mxu0
  %v132 = vadd.f32 %v54, %v131
  %133 = vmatmul.f32.gmra.mxu0 %v94
  %v134 = vpop.f32.mrf.mxu0
  %v135 = vadd.f32 %v59, %v134
  %136 = vmatmul.f32.gmra.mxu0 %v97
  %v137 = vpop.f32.mrf.mxu0
  %v138 = vadd.f32 %v64, %v137
  %139 = vmatmul.f32.gmra.mxu0 %v100
  %v140 = vpop.f32.mrf.mxu0
  %v141 = vadd.f32 %v69, %v140
  %142 = vmatmul.f32.gmra.mxu0 %v103
  %v143 = vpop.f32.mrf.mxu0
  %v144 = vadd.f32 %v74, %v143
  %145 = vmatmul.f32.gmra.mxu0 %v106
  %v146 = vpop.f32.mrf.mxu0
  %v147 = vadd.f32 %v79, %v146
  %148 = vmatmul.f32.gmra.mxu0 %v109
  %v149 = vpop.f32.mrf.mxu0
  %v150 = vadd.f32 %v84, %v149
  %151 = vdwg.mxu0
  %v152 = vmax.f32 %v129, 0.0
  %v153 = vmax.f32 %v132, 0.0
  %v154 = vmax.f32 %v135, 0.0
  %v155 = vmax.f32 %v138, 0.0
  %v156 = vmax.f32 %v141, 0.0
  %v157 = vmax.f32 %v144, 0.0
  %v158 = vmax.f32 %v147, 0.0
  %v159 = vmax.f32 %v150, 0.0
  %v160 = vld [vmem:[%s3] sm:$0xff]
  %v161 = vld [vmem:[%s3 + $0x8] sm:$0xff]
  %v162 = vld [vmem:[%s3 + $0x10] sm:$0xff]
  %v163 = vld [vmem:[%s3 + $0x18] sm:$0xff]
  %v164 = vld [vmem:[%s3 + $0x20] sm:$0xff]
  %v165 = vld [vmem:[%s3 + $0x28] sm:$0xff]
  %v166 = vld [vmem:[%s3 + $0x30] sm:$0xff]
  %v167 = vld [vmem:[%s3 + $0x38] sm:$0xff]
  %v168 = vld [vmem:[%s4] sm:$0xff]
  %v169 = vld [vmem:[%s4 + $0x8] sm:$0xff]
  %v170 = vld [vmem:[%s4 + $0x10] sm:$0xff]
  %v171 = vld [vmem:[%s4 + $0x18] sm:$0xff]
  %v172 = vld [vmem:[%s4 + $0x20] sm:$0xff]
  %v173 = vld [vmem:[%s4 + $0x28] sm:$0xff]
  %v174 = vld [vmem:[%s4 + $0x30] sm:$0xff]
  %v175 = vld [vmem:[%s4 + $0x38] sm:$0xff]
  %177 = vset.pattern.permute.xlu0 0
  %178 = vperm.xlu0 %177, %v168
  %v179 = vpop.permute.xlu0 %178
  %182 = vset.pattern.permute.xlu0 0
  %183 = vperm.xlu0 %182, %v169
  %v184 = vpop.permute.xlu0 %183
  %187 = vset.pattern.permute.xlu0 0
  %188 = vperm.xlu0 %187, %v170
  %v189 = vpop.permute.xlu0 %188
  %192 = vset.pattern.permute.xlu0 0
  %193 = vperm.xlu0 %192, %v171
  %v194 = vpop.permute.xlu0 %193
  %197 = vset.pattern.permute.xlu0 0
  %198 = vperm.xlu0 %197, %v172
  %v199 = vpop.permute.xlu0 %198
  %202 = vset.pattern.permute.xlu0 0
  %203 = vperm.xlu0 %202, %v173
  %v204 = vpop.permute.xlu0 %203
  %207 = vset.pattern.permute.xlu0 0
  %208 = vperm.xlu0 %207, %v174
  %v209 = vpop.permute.xlu0 %208
  %212 = vset.pattern.permute.xlu0 0
  %213 = vperm.xlu0 %212, %v175
  %v214 = vpop.permute.xlu0 %213
  %vm216 = vcmask 523264
  %v218 = vsel %vm216, %v160, 0
  %v221 = vsel %vm216, %v161, 0
  %v224 = vsel %vm216, %v162, 0
  %v227 = vsel %vm216, %v163, 0
  %v230 = vsel %vm216, %v164, 0
  %v233 = vsel %vm216, %v165, 0
  %v236 = vsel %vm216, %v166, 0
  %v239 = vsel %vm216, %v167, 0
  %241 = vmatpush.msra.mxu0 0.0
  %242 = vmatpush.msra.mxu0 0.0
  %243 = vmatpush.msra.mxu0 0.0
  %244 = vmatpush.msra.mxu0 0.0
  %245 = vmatpush.msra.mxu0 0.0
  %246 = vmatpush.msra.mxu0 0.0
  %247 = vmatpush.msra.mxu0 0.0
  %248 = vmatpush.msra.mxu0 0.0
  %249 = vmatpush.msra.mxu0 %v159
  %250 = vmatpush.msra.mxu0 %v158
  %251 = vmatpush.msra.mxu0 %v157
  %252 = vmatpush.msra.mxu0 %v156
  %253 = vmatpush.msra.mxu0 %v155
  %254 = vmatpush.msra.mxu0 %v154
  %255 = vmatpush.msra.mxu0 %v153
  %256 = vmatpush.msra.mxu0 %v152
  %257 = vmatmul.f32.gmra.mxu0 %v218
  %v258 = vpop.f32.mrf.mxu0
  %v259 = vadd.f32 %v179, %v258
  %260 = vmatmul.f32.gmra.mxu0 %v221
  %v261 = vpop.f32.mrf.mxu0
  %v262 = vadd.f32 %v184, %v261
  %263 = vmatmul.f32.gmra.mxu0 %v224
  %v264 = vpop.f32.mrf.mxu0
  %v265 = vadd.f32 %v189, %v264
  %266 = vmatmul.f32.gmra.mxu0 %v227
  %v267 = vpop.f32.mrf.mxu0
  %v268 = vadd.f32 %v194, %v267
  %269 = vmatmul.f32.gmra.mxu0 %v230
  %v270 = vpop.f32.mrf.mxu0
  %v271 = vadd.f32 %v199, %v270
  %272 = vmatmul.f32.gmra.mxu0 %v233
  %v273 = vpop.f32.mrf.mxu0
  %v274 = vadd.f32 %v204, %v273
  %275 = vmatmul.f32.gmra.mxu0 %v236
  %v276 = vpop.f32.mrf.mxu0
  %v277 = vadd.f32 %v209, %v276
  %278 = vmatmul.f32.gmra.mxu0 %v239
  %v279 = vpop.f32.mrf.mxu0
  %v280 = vadd.f32 %v214, %v279
  %281 = vdwg.mxu0
  %v282 = vmax.f32 %v259, 0.0
  %v283 = vmax.f32 %v262, 0.0
  %v284 = vmax.f32 %v265, 0.0
  %v285 = vmax.f32 %v268, 0.0
  %v286 = vmax.f32 %v271, 0.0
  %v287 = vmax.f32 %v274, 0.0
  %v288 = vmax.f32 %v277, 0.0
  %v289 = vmax.f32 %v280, 0.0
  %v290 = vld [vmem:[%s5] sm:$0x1]
  %v291 = vld [vmem:[#allocation2] sm:$0x1]
  %293 = vset.pattern.permute.xlu0 0
  %294 = vperm.xlu0 %293, %v291
  %v295 = vpop.permute.xlu0 %294
  %v297 = vperm.slane %v295, 0
  %v299 = vsel %vm216, %v290, 0
  %301 = vmatpush.msra.mxu0 0.0
  %302 = vmatpush.msra.mxu0 0.0
  %303 = vmatpush.msra.mxu0 0.0
  %304 = vmatpush.msra.mxu0 0.0
  %305 = vmatpush.msra.mxu0 0.0
  %306 = vmatpush.msra.mxu0 0.0
  %307 = vmatpush.msra.mxu0 0.0
  %308 = vmatpush.msra.mxu0 0.0
  %309 = vmatpush.msra.mxu0 %v289
  %310 = vmatpush.msra.mxu0 %v288
  %311 = vmatpush.msra.mxu0 %v287
  %312 = vmatpush.msra.mxu0 %v286
  %313 = vmatpush.msra.mxu0 %v285
  %314 = vmatpush.msra.mxu0 %v284
  %315 = vmatpush.msra.mxu0 %v283
  %316 = vmatpush.msra.mxu0 %v282
  %317 = vmatmul.f32.gmra.mxu0 %v299
  %v318 = vpop.f32.mrf.mxu0
  %v319 = vadd.f32 %v297, %v318
  %320 = vdwg.mxu0
  %321 = vst [vmem:[%s7] sm:$0x1] %v319
  // Predicated region
  $region30: #{ppo_value_net_forward.1} parent=0 // pred_check
    _
  $region31: #{ppo_value_net_forward.1} parent=0 // pred_check_branch
    %323 = sbr.rel (0) target = $region33
  $region32: #{ppo_value_net_forward.1} parent=0 // pred_region
    _
  $region33: #{ppo_value_net_forward.1} parent=0 // pred_fallthru
    _
  // Predicated region
  $region34: #{ppo_value_net_forward.1} parent=0 // pred_check
    _
  $region35: #{ppo_value_net_forward.1} parent=0 // pred_check_branch
    %325 = sbr.rel (0) target = $region37
  $region36: #{ppo_value_net_forward.1} parent=0 // pred_region
    _
  $region37: #{ppo_value_net_forward.1} parent=0 // pred_fallthru
    _

</llo_original>
